<compile_context>
chip_gen: v5e
topology: v5e:2x2
jax: 0.10.0
libtpu: 0.0.40
codegen_flags: <defaults>
</compile_context>

<pallas_src>
import functools
import math

import jax
import jax.numpy as jnp
from jax.experimental import pallas as pl
from jax.experimental.pallas import tpu as pltpu


_CLAMP_LO = 1e-4
_CLAMP_HI = 1.0 - 1e-4


# ----------------------------------------------------------------------------
# Focal loss kernel
# ----------------------------------------------------------------------------
def _focal_kernel(hm_ref, gt_ref, out_ref, loss_acc, cnt_acc, *, apply_sigmoid):
    i = pl.program_id(0)

    @pl.when(i == 0)
    def _():
        loss_acc[...] = jnp.zeros_like(loss_acc)
        cnt_acc[...] = jnp.zeros_like(cnt_acc)

    x = hm_ref[...].astype(jnp.float32)           # (row_tile, HW)
    gt = gt_ref[...].astype(jnp.float32)

    if apply_sigmoid:
        # pred = clamp(sigmoid(x), 1e-4, 1-1e-4), with stable / EUP-light math:
        #   log(sigmoid(x))     = -(relu(-x) + log(1 + exp(-|x|)))
        #   log(1 - sigmoid(x)) = -(relu( x) + log(1 + exp(-|x|)))
        # (clamp on pred <=> clip of both logs to [log(1e-4), log(1-1e-4)])
        e = jnp.exp(-jnp.abs(x))                  # 1 EUP exp
        lg = jnp.log(1.0 + e)                     # 1 EUP log
        log_lo = jnp.float32(math.log(_CLAMP_LO))
        log_hi = jnp.float32(math.log(_CLAMP_HI))
        log_p = jnp.clip(-(jnp.maximum(-x, 0.0) + lg), log_lo, log_hi)
        log_1mp = jnp.clip(-(jnp.maximum(x, 0.0) + lg), log_lo, log_hi)
        r = pl.reciprocal(1.0 + e, approx=True)   # EUP, only feeds the weights
        pred = jnp.where(x >= 0.0, r, e * r)
        pred = jnp.clip(pred, _CLAMP_LO, _CLAMP_HI)
    else:
        # TODO(synk): original CenterNet switches to MSELoss when mse_loss=True;
        # the given spec applies FocalLoss to the raw predictions, reproduced here.
        pred = x
        log_p = jnp.log(pred)
        log_1mp = jnp.log(1.0 - pred)

    pos_inds = (gt == 1.0).astype(jnp.float32)
    neg_inds = (gt < 1.0).astype(jnp.float32)
    one_m_gt = 1.0 - gt
    neg_weights = (one_m_gt * one_m_gt) * (one_m_gt * one_m_gt)   # (1-gt)^4
    one_m_pred = 1.0 - pred

    pos_loss = log_p * (one_m_pred * one_m_pred) * pos_inds
    neg_loss = log_1mp * (pred * pred) * neg_weights * neg_inds

    # Per-tile partial accumulation (lane-wide); full reduce only at the end.
    loss_acc[...] += jnp.sum(pos_loss + neg_loss, axis=0, keepdims=True)
    cnt_acc[...] += jnp.sum(pos_inds, axis=0, keepdims=True)

    @pl.when(i == pl.num_programs(0) - 1)
    def _():
        out_ref[0] = jnp.sum(loss_acc[...])       # pos_sum + neg_sum
        out_ref[1] = jnp.sum(cnt_acc[...])        # num_pos


def _pick_row_tile(rows, hw, max_block_bytes=4 * 1024 * 1024):
    """Largest row tile that divides `rows`, is a multiple of 8 (or == rows),
    and keeps one f32 input block <= max_block_bytes (VMEM-safe on v5e/v6e/v7x
    with double-buffering of 2 inputs)."""
    bytes_per_row = hw * 4
    max_rows = max(1, max_block_bytes // bytes_per_row)
    best = None
    for tr in range(1, rows + 1):
        if rows % tr:
            continue
        if tr % 8 != 0 and tr != rows:
            continue
        if tr <= max_rows:
            best = tr
        elif best is not None:
            break
    if best is None:
        best = 8 if rows % 8 == 0 else rows
    return best


def focal_loss(hm_logits, gt, apply_sigmoid=True):
    B, C, H, W = hm_logits.shape
    R, HW = B * C, H * W
    hm2 = hm_logits.reshape(R, HW)     # pure reshape, native dtype (no cast)
    gt2 = gt.reshape(R, HW)
    tr = _pick_row_tile(R, HW)
    grid = (R // tr,)

    sums = pl.pallas_call(
        functools.partial(_focal_kernel, apply_sigmoid=apply_sigmoid),
        out_shape=jax.ShapeDtypeStruct((2,), jnp.float32),
        grid=grid,
        in_specs=[pl.BlockSpec((tr, HW), lambda i: (i, 0)),
                  pl.BlockSpec((tr, HW), lambda i: (i, 0))],
        out_specs=pl.BlockSpec(memory_space=pltpu.MemorySpace.SMEM),
        scratch_shapes=[pltpu.VMEM((1, HW), jnp.float32),
                        pltpu.VMEM((1, HW), jnp.float32)],
        compiler_params=pltpu.CompilerParams(
            # accumulation carries across the row axis -> must stay sequential
            dimension_semantics=("arbitrary",),
            vmem_limit_bytes=32 * 1024 * 1024),
    )(hm2, gt2)

    loss_sum, num_pos = sums[0], sums[1]
    denom = jnp.where(num_pos > 0, num_pos, 1.0)
    # num_pos == 0  ->  pos_sum == 0, so loss_sum == neg_sum: loss = -neg_sum
    return jnp.where(num_pos > 0, -loss_sum / denom, -loss_sum)


# ----------------------------------------------------------------------------
# Fused RegL1 (wh + reg heads): scalar-prefetch gather + masked L1 sums
# ----------------------------------------------------------------------------
def _regl1_pair_kernel(ind_ref,                    # SMEM (B, K) int32 (prefetch)
                       wh_ref, reg_ref,            # VMEM (HW, Cw) / (HW, Cr)
                       mask_ref,                   # VMEM (K, 1)
                       wh_t_ref, reg_t_ref,        # VMEM (K, Cw) / (K, Cr)
                       out_ref,                    # SMEM (3,)
                       wh_pred, reg_pred,          # VMEM (K, Cw)/(K, Cr) scratch
                       *, hw):
    b = pl.program_id(0)

    @pl.when(b == 0)
    def _():
        out_ref[0] = jnp.float32(0.0)
        out_ref[1] = jnp.float32(0.0)
        out_ref[2] = jnp.float32(0.0)

    k_max = wh_pred.shape[0]

    @pl.loop(0, k_max)
    def _(k):
        idx = ind_ref[b, k]
        idx = jnp.clip(idx, 0, hw - 1)   # guard against OOB indices (silent in ref)
        wh_pred[pl.ds(k, 1), :] = wh_ref[pl.ds(idx, 1), :].astype(jnp.float32)
        reg_pred[pl.ds(k, 1), :] = reg_ref[pl.ds(idx, 1), :].astype(jnp.float32)

    m = mask_ref[...].astype(jnp.float32)           # (K, 1)
    wh_t = wh_t_ref[...].astype(jnp.float32)        # (K, Cw)
    reg_t = reg_t_ref[...].astype(jnp.float32)      # (K, Cr)

    out_ref[0] = out_ref[0] + jnp.sum(jnp.abs(wh_pred[...] * m - wh_t * m))
    out_ref[1] = out_ref[1] + jnp.sum(jnp.abs(reg_pred[...] * m - reg_t * m))
    out_ref[2] = out_ref[2] + jnp.sum(m)            # mask count (pre channel-expand)


def reg_l1_loss_pair(wh_out, reg_out, mask, ind, wh_target, reg_target):
    B, Cw, H, W = wh_out.shape
    _, Cr, _, _ = reg_out.shape
    HW = H * W
    K = ind.shape[1]

    # Channel-last per-batch layout (tiny C<=4 maps; negligible traffic) so the
    # gather is a dynamic sublane slice inside the kernel.
    wh_feat = jnp.transpose(wh_out, (0, 2, 3, 1)).reshape(B, HW, Cw)
    reg_feat = jnp.transpose(reg_out, (0, 2, 3, 1)).reshape(B, HW, Cr)
    mask3 = mask.reshape(B, K, 1)
    ind_i32 = ind.astype(jnp.int32)

    sums = pl.pallas_call(
        functools.partial(_regl1_pair_kernel, hw=HW),
        out_shape=jax.ShapeDtypeStruct((3,), jnp.float32),
        grid_spec=pltpu.PrefetchScalarGridSpec(
            num_scalar_prefetch=1,
            grid=(B,),
            in_specs=[
                pl.BlockSpec((None, HW, Cw), lambda b, ind_ref: (b, 0, 0)),
                pl.BlockSpec((None, HW, Cr), lambda b, ind_ref: (b, 0, 0)),
                pl.BlockSpec((None, K, 1), lambda b, ind_ref: (b, 0, 0)),
                pl.BlockSpec((None, K, Cw), lambda b, ind_ref: (b, 0, 0)),
                pl.BlockSpec((None, K, Cr), lambda b, ind_ref: (b, 0, 0)),
            ],
            out_specs=pl.BlockSpec(memory_space=pltpu.MemorySpace.SMEM),
            scratch_shapes=[pltpu.VMEM((K, Cw), jnp.float32),
                            pltpu.VMEM((K, Cr), jnp.float32)],
        ),
        compiler_params=pltpu.CompilerParams(
            dimension_semantics=("arbitrary",)),
    )(ind_i32, wh_feat, reg_feat, mask3, wh_target, reg_target)

    wh_loss = sums[0] / (sums[2] * Cw + 0.0001)
    off_loss = sums[1] / (sums[2] * Cr + 0.0001)
    return wh_loss, off_loss


# ----------------------------------------------------------------------------
# CtdetLoss forward
# ----------------------------------------------------------------------------
def ctdet_loss(outputs, batch, cfg):
    hm_loss = jnp.float32(0.0)
    wh_loss = jnp.float32(0.0)
    off_loss = jnp.float32(0.0)
    loss = jnp.float32(0.0)
    loss_stats = {}
    num_stacks = cfg['num_stacks']
    want_wh = cfg['wh_weight'] > 0
    want_off = cfg['reg_offset'] and cfg['off_weight'] > 0

    for s in range(num_stacks):
        output = outputs[s]
        hm_loss = hm_loss + focal_loss(
            output['hm'], batch['hm'],
            apply_sigmoid=not cfg['mse_loss']) / num_stacks

        if want_wh and want_off:
            l_wh, l_off = reg_l1_loss_pair(
                output['wh'], output['reg'], batch['reg_mask'], batch['ind'],
                batch['wh'], batch['reg'])
            wh_loss = wh_loss + l_wh / num_stacks
            off_loss = off_loss + l_off / num_stacks
        elif want_wh:
            l_wh, _ = reg_l1_loss_pair(
                output['wh'], output['wh'], batch['reg_mask'], batch['ind'],
                batch['wh'], batch['wh'])
            wh_loss = wh_loss + l_wh / num_stacks
        elif want_off:
            _, l_off = reg_l1_loss_pair(
                output['reg'], output['reg'], batch['reg_mask'], batch['ind'],
                batch['reg'], batch['reg'])
            off_loss = off_loss + l_off / num_stacks

        loss = (cfg['hm_weight'] * hm_loss + cfg['wh_weight'] * wh_loss +
                cfg['off_weight'] * off_loss)
        loss_stats = {'loss': loss, 'hm_loss': hm_loss,
                      'wh_loss': wh_loss, 'off_loss': off_loss}
    return loss, loss_stats


if __name__ == "__main__":
    cfg = {
        'num_stacks': 2,
        'mse_loss': False,
        'hm_weight': 1.0,
        'wh_weight': 0.1,
        'off_weight': 1.0,
        'reg_offset': True,
    }

    B, C_HM, H, W = 2, 4, 16, 16
    K = 8            # max objects per image
    C_REG = 2        # wh / reg channels

    key = jax.random.PRNGKey(0)
    keys = jax.random.split(key, 10)

    # network outputs (logits / raw regressions) per stack
    outputs = []
    for s in range(cfg['num_stacks']):
        ks = jax.random.split(keys[s], 3)
        outputs.append({
            'hm': jax.random.normal(ks[0], (B, C_HM, H, W), jnp.float32),
            'wh': jax.random.normal(ks[1], (B, C_REG, H, W), jnp.float32) * 2.0,
            'reg': jax.random.normal(ks[2], (B, C_REG, H, W), jnp.float32) * 0.5,
        })

    # ground-truth batch
    gt_hm = jax.random.uniform(keys[3], (B, C_HM, H, W), jnp.float32) * 0.9
    gt_hm = gt_hm.at[0, 1, 4, 5].set(1.0)
    gt_hm = gt_hm.at[0, 2, 10, 3].set(1.0)
    gt_hm = gt_hm.at[1, 0, 7, 7].set(1.0)

    ind = jax.random.randint(keys[4], (B, K), 0, H * W, jnp.int32)
    reg_mask = jnp.zeros((B, K), jnp.float32).at[:, :3].set(1.0)
    gt_wh = jax.random.uniform(keys[5], (B, K, C_REG), jnp.float32) * 4.0
    gt_reg = jax.random.uniform(keys[6], (B, K, C_REG), jnp.float32)

    batch = {'hm': gt_hm, 'reg_mask': reg_mask, 'ind': ind,
             'wh': gt_wh, 'reg': gt_reg}

    loss, loss_stats = ctdet_loss(outputs, batch, cfg)
    loss = jax.block_until_ready(loss)
    for v in loss_stats.values():
        jax.block_until_ready(v)

    assert jnp.isfinite(loss), "loss is not finite"
    print("KERNEL_OK")
</pallas_src>

<mosaic_0001>
module attributes {stable_mosaic.version = 11 : i64} {
  func.func @_focal_kernel(%arg0: i32, %arg1: memref<8x256xf32, #tpu.memory_space<vmem>>, %arg2: memref<8x256xf32, #tpu.memory_space<vmem>>, %arg3: memref<2xf32, #tpu.memory_space<smem>>, %arg4: memref<1x256xf32, #tpu.memory_space<vmem>>, %arg5: memref<1x256xf32, #tpu.memory_space<vmem>>) attributes {dimension_semantics = [#tpu.dimension_semantics<arbitrary>], iteration_bounds = array<i64: 1>, scalar_prefetch = 0 : i64, scratch_operands = 2 : i64, tpu.core_type = #tpu.core_type<tc>, window_params = [{transform_indices = @transform_0, window_bounds = array<i64: 8, 256>}, {transform_indices = @transform_1, window_bounds = array<i64: 8, 256>}, {transform_indices = @transform_2, window_bounds = array<i64: 2>}]} {
    %c0_i32 = arith.constant 0 : i32
    %0 = arith.cmpi eq, %arg0, %c0_i32 : i32
    %1 = arith.extui %0 : i1 to i32
    %c0_i32_0 = arith.constant 0 : i32
    %2 = arith.cmpi ne, %1, %c0_i32_0 : i32
    scf.if %2 {
      %cst_34 = arith.constant 0.000000e+00 : f32
      %79 = vector.broadcast %cst_34 : f32 to vector<1x256xf32>
      %c0_35 = arith.constant 0 : index
      %c0_36 = arith.constant 0 : index
      %80 = vector.load %arg4[%c0_35, %c0_36] : memref<1x256xf32, #tpu.memory_space<vmem>>, vector<1x256xf32>
      tpu.vector_store %arg4[%c0_35, %c0_36], %79 {strides = array<i32>} : memref<1x256xf32, #tpu.memory_space<vmem>>, vector<1x256xf32>,
      %cst_37 = arith.constant 0.000000e+00 : f32
      %81 = vector.broadcast %cst_37 : f32 to vector<1x256xf32>
      %c0_38 = arith.constant 0 : index
      %c0_39 = arith.constant 0 : index
      %82 = vector.load %arg5[%c0_38, %c0_39] : memref<1x256xf32, #tpu.memory_space<vmem>>, vector<1x256xf32>
      tpu.vector_store %arg5[%c0_38, %c0_39], %81 {strides = array<i32>} : memref<1x256xf32, #tpu.memory_space<vmem>>, vector<1x256xf32>,
    } else {
    }
    %c0 = arith.constant 0 : index
    %c0_1 = arith.constant 0 : index
    %3 = vector.load %arg1[%c0, %c0_1] : memref<8x256xf32, #tpu.memory_space<vmem>>, vector<8x256xf32>
    %c0_2 = arith.constant 0 : index
    %c0_3 = arith.constant 0 : index
    %4 = vector.load %arg2[%c0_2, %c0_3] : memref<8x256xf32, #tpu.memory_space<vmem>>, vector<8x256xf32>
    %5 = math.absf %3 : vector<8x256xf32>
    %cst = arith.constant 0.000000e+00 : f32
    %6 = vector.broadcast %cst : f32 to vector<8x256xf32>
    %7 = arith.subf %6, %5 : vector<8x256xf32>
    %8 = math.exp %7 : vector<8x256xf32>
    %cst_4 = arith.constant 1.000000e+00 : f32
    %9 = vector.broadcast %cst_4 : f32 to vector<8x256xf32>
    %10 = arith.addf %9, %8 : vector<8x256xf32>
    %11 = math.log %10 : vector<8x256xf32>
    %cst_5 = arith.constant 0.000000e+00 : f32
    %12 = vector.broadcast %cst_5 : f32 to vector<8x256xf32>
    %13 = arith.subf %12, %3 : vector<8x256xf32>
    %cst_6 = arith.constant 0.000000e+00 : f32
    %14 = vector.broadcast %cst_6 : f32 to vector<8x256xf32>
    %15 = arith.maximumf %13, %14 : vector<8x256xf32>
    %16 = arith.addf %15, %11 : vector<8x256xf32>
    %cst_7 = arith.constant 0.000000e+00 : f32
    %17 = vector.broadcast %cst_7 : f32 to vector<8x256xf32>
    %18 = arith.subf %17, %16 : vector<8x256xf32>
    %cst_8 = arith.constant -9.21034049 : f32
    %cst_9 = arith.constant -1.000050e-04 : f32
    %19 = vector.broadcast %cst_8 : f32 to vector<8x256xf32>
    %20 = arith.maximumf %19, %18 : vector<8x256xf32>
    %21 = vector.broadcast %cst_9 : f32 to vector<8x256xf32>
    %22 = arith.minimumf %21, %20 : vector<8x256xf32>
    %cst_10 = arith.constant 0.000000e+00 : f32
    %23 = vector.broadcast %cst_10 : f32 to vector<8x256xf32>
    %24 = arith.maximumf %3, %23 : vector<8x256xf32>
    %25 = arith.addf %24, %11 : vector<8x256xf32>
    %cst_11 = arith.constant 0.000000e+00 : f32
    %26 = vector.broadcast %cst_11 : f32 to vector<8x256xf32>
    %27 = arith.subf %26, %25 : vector<8x256xf32>
    %cst_12 = arith.constant -9.21034049 : f32
    %cst_13 = arith.constant -1.000050e-04 : f32
    %28 = vector.broadcast %cst_12 : f32 to vector<8x256xf32>
    %29 = arith.maximumf %28, %27 : vector<8x256xf32>
    %30 = vector.broadcast %cst_13 : f32 to vector<8x256xf32>
    %31 = arith.minimumf %30, %29 : vector<8x256xf32>
    %cst_14 = arith.constant 1.000000e+00 : f32
    %32 = vector.broadcast %cst_14 : f32 to vector<8x256xf32>
    %33 = arith.addf %32, %8 : vector<8x256xf32>
    %34 = tpu.reciprocal %33 {approx = true} : vector<8x256xf32> -> vector<8x256xf32>
    %cst_15 = arith.constant 0.000000e+00 : f32
    %35 = vector.broadcast %cst_15 : f32 to vector<8x256xf32>
    %36 = arith.cmpf oge, %3, %35 : vector<8x256xf32>
    %37 = arith.mulf %8, %34 : vector<8x256xf32>
    %38 = arith.select %36, %34, %37 : vector<8x256xi1>, vector<8x256xf32>
    %cst_16 = arith.constant 9.99999974E-5 : f32
    %cst_17 = arith.constant 0.999899983 : f32
    %39 = vector.broadcast %cst_16 : f32 to vector<8x256xf32>
    %40 = arith.maximumf %39, %38 : vector<8x256xf32>
    %41 = vector.broadcast %cst_17 : f32 to vector<8x256xf32>
    %42 = arith.minimumf %41, %40 : vector<8x256xf32>
    %cst_18 = arith.constant 1.000000e+00 : f32
    %43 = vector.broadcast %cst_18 : f32 to vector<8x256xf32>
    %44 = arith.cmpf oeq, %4, %43 : vector<8x256xf32>
    %45 = arith.extui %44 : vector<8x256xi1> to vector<8x256xi32>
    %46 = arith.sitofp %45 : vector<8x256xi32> to vector<8x256xf32>
    %cst_19 = arith.constant 1.000000e+00 : f32
    %47 = vector.broadcast %cst_19 : f32 to vector<8x256xf32>
    %48 = arith.cmpf olt, %4, %47 : vector<8x256xf32>
    %49 = arith.extui %48 : vector<8x256xi1> to vector<8x256xi32>
    %50 = arith.sitofp %49 : vector<8x256xi32> to vector<8x256xf32>
    %cst_20 = arith.constant 1.000000e+00 : f32
    %51 = vector.broadcast %cst_20 : f32 to vector<8x256xf32>
    %52 = arith.subf %51, %4 : vector<8x256xf32>
    %53 = arith.mulf %52, %52 : vector<8x256xf32>
    %54 = arith.mulf %52, %52 : vector<8x256xf32>
    %55 = arith.mulf %53, %54 : vector<8x256xf32>
    %cst_21 = arith.constant 1.000000e+00 : f32
    %56 = vector.broadcast %cst_21 : f32 to vector<8x256xf32>
    %57 = arith.subf %56, %42 : vector<8x256xf32>
    %58 = arith.mulf %57, %57 : vector<8x256xf32>
    %59 = arith.mulf %22, %58 : vector<8x256xf32>
    %60 = arith.mulf %59, %46 : vector<8x256xf32>
    %61 = arith.mulf %42, %42 : vector<8x256xf32>
    %62 = arith.mulf %31, %61 : vector<8x256xf32>
    %63 = arith.mulf %62, %55 : vector<8x256xf32>
    %64 = arith.mulf %63, %50 : vector<8x256xf32>
    %c0_22 = arith.constant 0 : index
    %c0_23 = arith.constant 0 : index
    %65 = vector.load %arg4[%c0_22, %c0_23] : memref<1x256xf32, #tpu.memory_space<vmem>>, vector<1x256xf32>
    %66 = arith.addf %60, %64 : vector<8x256xf32>
    %cst_24 = arith.constant dense<0.000000e+00> : vector<256xf32>
    %67 = vector.multi_reduction <add>, %66, %cst_24 [0] : vector<8x256xf32> to vector<256xf32>
    %68 = vector.shape_cast %67 : vector<256xf32> to vector<1x256xf32>
    %69 = arith.addf %65, %68 : vector<1x256xf32>
    %c0_25 = arith.constant 0 : index
    %c0_26 = arith.constant 0 : index
    %70 = vector.load %arg4[%c0_25, %c0_26] : memref<1x256xf32, #tpu.memory_space<vmem>>, vector<1x256xf32>
    tpu.vector_store %arg4[%c0_25, %c0_26], %69 {strides = array<i32>} : memref<1x256xf32, #tpu.memory_space<vmem>>, vector<1x256xf32>,
    %c0_27 = arith.constant 0 : index
    %c0_28 = arith.constant 0 : index
    %71 = vector.load %arg5[%c0_27, %c0_28] : memref<1x256xf32, #tpu.memory_space<vmem>>, vector<1x256xf32>
    %cst_29 = arith.constant dense<0.000000e+00> : vector<256xf32>
    %72 = vector.multi_reduction <add>, %46, %cst_29 [0] : vector<8x256xf32> to vector<256xf32>
    %73 = vector.shape_cast %72 : vector<256xf32> to vector<1x256xf32>
    %74 = arith.addf %71, %73 : vector<1x256xf32>
    %c0_30 = arith.constant 0 : index
    %c0_31 = arith.constant 0 : index
    %75 = vector.load %arg5[%c0_30, %c0_31] : memref<1x256xf32, #tpu.memory_space<vmem>>, vector<1x256xf32>
    tpu.vector_store %arg5[%c0_30, %c0_31], %74 {strides = array<i32>} : memref<1x256xf32, #tpu.memory_space<vmem>>, vector<1x256xf32>,
    %c0_i32_32 = arith.constant 0 : i32
    %76 = arith.cmpi eq, %arg0, %c0_i32_32 : i32
    %77 = arith.extui %76 : i1 to i32
    %c0_i32_33 = arith.constant 0 : i32
    %78 = arith.cmpi ne, %77, %c0_i32_33 : i32
    scf.if %78 {
      %c0_34 = arith.constant 0 : index
      %c0_35 = arith.constant 0 : index
      %79 = vector.load %arg4[%c0_34, %c0_35] : memref<1x256xf32, #tpu.memory_space<vmem>>, vector<1x256xf32>
      %80 = vector.shape_cast %79 : vector<1x256xf32> to vector<1x1x256xf32>
      %cst_36 = arith.constant dense<0.000000e+00> : vector<1xf32>
      %81 = vector.multi_reduction <add>, %80, %cst_36 [1, 2] : vector<1x1x256xf32> to vector<1xf32>
      %82 = vector.shape_cast %81 : vector<1xf32> to vector<1x1x1xf32>
      %83 = vector.extract %82[0, 0, 0] : f32 from vector<1x1x1xf32>
      %c0_37 = arith.constant 0 : index
      %84 = memref.load %arg3[%c0_37] : memref<2xf32, #tpu.memory_space<smem>>
      memref.store %83, %arg3[%c0_37] : memref<2xf32, #tpu.memory_space<smem>>
      %c0_38 = arith.constant 0 : index
      %c0_39 = arith.constant 0 : index
      %85 = vector.load %arg5[%c0_38, %c0_39] : memref<1x256xf32, #tpu.memory_space<vmem>>, vector<1x256xf32>
      %86 = vector.shape_cast %85 : vector<1x256xf32> to vector<1x1x256xf32>
      %cst_40 = arith.constant dense<0.000000e+00> : vector<1xf32>
      %87 = vector.multi_reduction <add>, %86, %cst_40 [1, 2] : vector<1x1x256xf32> to vector<1xf32>
      %88 = vector.shape_cast %87 : vector<1xf32> to vector<1x1x1xf32>
      %89 = vector.extract %88[0, 0, 0] : f32 from vector<1x1x1xf32>
      %c1 = arith.constant 1 : index
      %90 = memref.load %arg3[%c1] : memref<2xf32, #tpu.memory_space<smem>>
      memref.store %89, %arg3[%c1] : memref<2xf32, #tpu.memory_space<smem>>
    } else {
    }
    return
  }
  func.func @transform_0(%arg0: i32) -> (i32, i32) {
    %c0_i32 = arith.constant 0 : i32
    %c0_i32_0 = arith.constant 0 : i32
    return %arg0, %c0_i32 : i32, i32
  }
  func.func @transform_1(%arg0: i32) -> (i32, i32) {
    %c0_i32 = arith.constant 0 : i32
    %c0_i32_0 = arith.constant 0 : i32
    return %arg0, %c0_i32 : i32, i32
  }
  func.func @transform_2(%arg0: i32) -> i32 {
    %c0_i32 = arith.constant 0 : i32
    %c0_i32_0 = arith.constant 0 : i32
    return %c0_i32 : i32
  }
}

</mosaic_0001>

<llo_original>
// kernel: tpu_custom_call.1
$region0: #{tpu_custom_call.1}
  #allocation0 [shape = 'u32[]', space=smem, size = 0x4, offset = 0x4, fixed_abs, tag = 'smem constant byte address 0x4 - core index']
  #allocation1 [shape = 'u32[72,128]{1,0:T(1,128)}', space=vmem, size = 0x9000, scoped, tag = 'internal scratch']
  #allocation2 [shape = 'f32[1,256]{1,0:T(1,128)}', space=vmem, size = 0x400, scoped, tag = 'scratch operand']
  #allocation3 [shape = 'f32[1,256]{1,0:T(1,128)}', space=vmem, size = 0x400, scoped, tag = 'scratch operand']
  %s0 = inlined_call_operand.hbm [shape: f32[8,256], index: 0, kind: input, shape index: {}]
  %s1 = inlined_call_operand.hbm [shape: f32[8,256], index: 1, kind: input, shape index: {}]
  %s2 = inlined_call_operand.hbm [shape: f32[2], index: 2, kind: output, shape index: {}]
  %s3 = sld [smem:[#allocation0]]
  $region34: #{tpu_custom_call.1} parent=0
    _
  %s5 = ssub.s32 1, %s3
  %s6 = scalar_select 0, %s5, %s3
  $region1: #{tpu_custom_call.1} parent=0
    #allocation4 [shape = 'u8[8192]{0}', space=vmem, size = 0x2000, scoped, tag = 'input window, operand 0, single buffered']
    #allocation5 [shape = 's32[1]{0}', space=sflag, size = 0x4, scoped, tag = 'scoped memory for tpu_custom_call.1']
    #allocation6 [shape = 's32[1]{0}', space=sflag, size = 0x4, scoped, tag = 'scoped memory for tpu_custom_call.1']
    #allocation7 [shape = 'u8[8192]{0}', space=vmem, size = 0x2000, scoped, tag = 'input window, operand 1, single buffered']
    #allocation8 [shape = 's32[1]{0}', space=sflag, size = 0x4, scoped, tag = 'scoped memory for tpu_custom_call.1']
    #allocation9 [shape = 'u8[512]{0}', space=smem, size = 0x200, scoped, tag = 'output window, operand 0, single buffered']
    %7 = vsyncpa [#allocation5], 0
    %8 = vsyncpa [#allocation8], 0
    %9 = vsyncpa [#allocation6], 0
    // Predicated region
    $region2: #{tpu_custom_call.1} parent=1 // pred_check
      _
    $region3: #{tpu_custom_call.1} parent=1 // pred_check_branch
      %11 = sbr.rel (0) target = $region5
    $region4: #{tpu_custom_call.1} parent=1 // pred_region
      %13 = vsyncadd [#allocation5], 0
      %s15 = sshll.u32 %s0, 4
      %s16 = int_to_ptr.hbm [resolvable:$true] %s15
      %s17 = sshll.u32 [#allocation4], 4
      %s18 = int_to_ptr.vmem [resolvable:$true] %s17
      %20 = dma.hbm_to_vmem [thread:$0]  %s16, 256, %s18, [#allocation5]
    $region5: #{tpu_custom_call.1} parent=1 // pred_fallthru
      _
    // Predicated region
    $region6: #{tpu_custom_call.1} parent=1 // pred_check
      _
    $region7: #{tpu_custom_call.1} parent=1 // pred_check_branch
      %22 = sbr.rel (0) target = $region9
    $region8: #{tpu_custom_call.1} parent=1 // pred_region
      %24 = vsyncadd [#allocation8], 0
      %s26 = sshll.u32 %s1, 4
      %s27 = int_to_ptr.hbm [resolvable:$true] %s26
      %s28 = sshll.u32 [#allocation7], 4
      %s29 = int_to_ptr.vmem [resolvable:$true] %s28
      %31 = dma.hbm_to_vmem [thread:$0]  %s27, 256, %s29, [#allocation8]
    $region9: #{tpu_custom_call.1} parent=1 // pred_fallthru
      _
    // Predicated region
    $region10: #{tpu_custom_call.1} parent=1 // pred_check
      _
    $region11: #{tpu_custom_call.1} parent=1 // pred_check_branch
      %33 = sbr.rel (0) target = $region13
    $region12: #{tpu_custom_call.1} parent=1 // pred_region
      %35 = dma.done [#allocation5], 256
    $region13: #{tpu_custom_call.1} parent=1 // pred_fallthru
      _
    // Predicated region
    $region14: #{tpu_custom_call.1} parent=1 // pred_check
      _
    $region15: #{tpu_custom_call.1} parent=1 // pred_check_branch
      %37 = sbr.rel (0) target = $region17
    $region16: #{tpu_custom_call.1} parent=1 // pred_region
      %39 = dma.done [#allocation8], 256
    $region17: #{tpu_custom_call.1} parent=1 // pred_fallthru
      _
    %p40 = scmp.eq.s32.totalorder 0, 0
    // Predicated region
    $region18: #{tpu_custom_call.1} parent=1 // pred_check
      %p41 = pneg %p40
    $region19: #{tpu_custom_call.1} parent=1 // pred_check_branch
      %43 = sbr.rel (%p41) target = $region21
    $region20: #{tpu_custom_call.1} parent=1 // pred_region
      %v44 = vlaneseq
      %vm45 = vcmp.ge.s32.totalorder %v44, 0
      %vm46 = vcmp.lt.s32.totalorder %v44, 256
      %vm47 = vmand %vm45, %vm46
      %48 = vst.msk [vmem:[#allocation2] sm:$0x3] %vm47, 0.0
      %49 = vst.msk [vmem:[#allocation3] sm:$0x3] %vm47, 0.0
    $region21: #{tpu_custom_call.1} parent=1 // pred_fallthru
      _
    %v50 = vld [vmem:[#allocation4] sm:$0xff]
    %v51 = vld [vmem:[#allocation4 + $0x8] sm:$0xff]
    %v52 = vld [vmem:[#allocation7] sm:$0xff]
    %v53 = vld [vmem:[#allocation7 + $0x8] sm:$0xff]
    %v54 = vand.u32 2147483647, %v50
    %v55 = vand.u32 2147483647, %v51
    %v56 = vsub.f32 0.0, %v54
    %v57 = vsub.f32 0.0, %v55
    %v58 = vmul.f32 %v56, 1.442695
    %v59 = vpow.pop %v58
    %v60 = vmul.f32 %v57, 1.442695
    %v61 = vpow.pop %v60
    %v62 = vadd.f32 %v59, 1.0
    %v63 = vadd.f32 %v61, 1.0
    %v64 = vlog2.pop %v62
    %v65 = vmul.f32 %v64, 0.6931472
    %v66 = vlog2.pop %v63
    %v67 = vmul.f32 %v66, 0.6931472
    %v68 = vsub.f32 0.0, %v50
    %v69 = vsub.f32 0.0, %v51
    %v70 = vmax.f32 %v68, 0.0
    %v71 = vmax.f32 %v69, 0.0
    %v72 = vadd.f32 %v70, %v65
    %v73 = vadd.f32 %v71, %v67
    %v74 = vsub.f32 0.0, %v72
    %v75 = vsub.f32 0.0, %v73
    %v76 = vmax.f32 %v74, -9.2103405
    %v77 = vmax.f32 %v75, -9.2103405
    %v78 = vmin.f32 %v76, -0.000100005
    %v79 = vmin.f32 %v77, -0.000100005
    %v80 = vmax.f32 %v50, 0.0
    %v81 = vmax.f32 %v51, 0.0
    %v82 = vadd.f32 %v80, %v65
    %v83 = vadd.f32 %v81, %v67
    %v84 = vsub.f32 0.0, %v82
    %v85 = vsub.f32 0.0, %v83
    %v86 = vmax.f32 %v84, -9.2103405
    %v87 = vmax.f32 %v85, -9.2103405
    %v88 = vmin.f32 %v86, -0.000100005
    %v89 = vmin.f32 %v87, -0.000100005
    %v90 = vrcp.pop %v62
    %v91 = vrcp.pop %v63
    %vm92 = vcmp.ge.f32.partialorder %v50, 0.0
    %vm93 = vcmp.ge.f32.partialorder %v51, 0.0
    %v94 = vmul.f32 %v59, %v90
    %v95 = vmul.f32 %v61, %v91
    %v96 = vsel %vm92, %v90, %v94
    %v97 = vsel %vm93, %v91, %v95
    %v98 = vmax.f32 %v96, 0.0001
    %v99 = vmax.f32 %v97, 0.0001
    %v100 = vmin.f32 %v98, 0.9999
    %v101 = vmin.f32 %v99, 0.9999
    %vm102 = vcmp.eq.f32.partialorder %v52, 1.0
    %vm103 = vcmp.eq.f32.partialorder %v53, 1.0
    %v104 = vsel %vm102, 1, 0
    %v105 = vsel %vm103, 1, 0
    %v106 = vcvt.s32.f32 %v104
    %v107 = vcvt.s32.f32 %v105
    %vm108 = vcmp.lt.f32.partialorder %v52, 1.0
    %vm109 = vcmp.lt.f32.partialorder %v53, 1.0
    %v110 = vsel %vm108, 1, 0
    %v111 = vsel %vm109, 1, 0
    %v112 = vcvt.s32.f32 %v110
    %v113 = vcvt.s32.f32 %v111
    %v114 = vsub.f32 1.0, %v52
    %v115 = vsub.f32 1.0, %v53
    %v116 = vmul.f32 %v114, %v114
    %v117 = vmul.f32 %v115, %v115
    %v118 = vmul.f32 %v116, %v116
    %v119 = vmul.f32 %v117, %v117
    %v120 = vsub.f32 1.0, %v100
    %v121 = vsub.f32 1.0, %v101
    %v122 = vmul.f32 %v120, %v120
    %v123 = vmul.f32 %v121, %v121
    %v124 = vmul.f32 %v78, %v122
    %v125 = vmul.f32 %v79, %v123
    %v126 = vmul.f32 %v124, %v106
    %v127 = vmul.f32 %v125, %v107
    %v128 = vmul.f32 %v100, %v100
    %v129 = vmul.f32 %v101, %v101
    %v130 = vmul.f32 %v88, %v128
    %v131 = vmul.f32 %v89, %v129
    %v132 = vmul.f32 %v130, %v118
    %v133 = vmul.f32 %v131, %v119
    %v134 = vmul.f32 %v132, %v112
    %v135 = vmul.f32 %v133, %v113
    %v136 = vld [vmem:[#allocation2] sm:$0x3]
    %v137 = vadd.f32 %v126, %v134
    %v138 = vadd.f32 %v127, %v135
    %v139 = vrot.slane %v137, 4
    %v140 = vadd.f32 %v137, %v139
    %v141 = vrot.slane %v140, 2
    %v142 = vadd.f32 %v140, %v141
    %v143 = vrot.slane %v142, 1
    %v144 = vadd.f32 %v142, %v143
    %v145 = vrot.slane %v138, 4
    %v146 = vadd.f32 %v138, %v145
    %v147 = vrot.slane %v146, 2
    %v148 = vadd.f32 %v146, %v147
    %v149 = vrot.slane %v148, 1
    %v150 = vadd.f32 %v148, %v149
    %v153 = vrot.slane %v150, 7
    %vm154 = vcmask 1040384
    %v155 = vsel %vm154, %v144, %v153
    %v157 = vadd.f32 %v136, %v155
    %v158 = vlaneseq
    %vm159 = vcmp.ge.s32.totalorder %v158, 0
    %vm160 = vcmp.lt.s32.totalorder %v158, 256
    %vm161 = vmand %vm159, %vm160
    %162 = vst.msk [vmem:[#allocation2] sm:$0x3] %vm161, %v157
    %v163 = vld [vmem:[#allocation3] sm:$0x3]
    %v164 = vrot.slane %v106, 4
    %v165 = vadd.f32 %v106, %v164
    %v166 = vrot.slane %v165, 2
    %v167 = vadd.f32 %v165, %v166
    %v168 = vrot.slane %v167, 1
    %v169 = vadd.f32 %v167, %v168
    %v170 = vrot.slane %v107, 4
    %v171 = vadd.f32 %v107, %v170
    %v172 = vrot.slane %v171, 2
    %v173 = vadd.f32 %v171, %v172
    %v174 = vrot.slane %v173, 1
    %v175 = vadd.f32 %v173, %v174
    %v178 = vrot.slane %v175, 7
    %v179 = vsel %vm154, %v169, %v178
    %v181 = vadd.f32 %v163, %v179
    %182 = vst.msk [vmem:[#allocation3] sm:$0x3] %vm161, %v181
    // Predicated region
    $region22: #{tpu_custom_call.1} parent=1 // pred_check
      %p183 = pneg %p40
    $region23: #{tpu_custom_call.1} parent=1 // pred_check_branch
      %185 = sbr.rel (%p183) target = $region25
    $region24: #{tpu_custom_call.1} parent=1 // pred_region
      %v186 = vld [vmem:[#allocation2] sm:$0x3]
      %v188 = vperm.slane %v186, 0
      %v189 = vperm.slane %v186, 1
      %v192 = vsel %vm154, %v188, 0.0
      %v193 = vsel %vm154, %v189, 0.0
      %v194 = vadd.f32 %v192, %v193
      %195 = vadd.xlane.f32.xlu0 %v194
      %v196 = vpop.xlane.xlu0 %195
      %v197 = vrot.slane %v196, 4
      %v198 = vadd.f32 %v196, %v197
      %v199 = vrot.slane %v198, 2
      %v200 = vadd.f32 %v198, %v199
      %v201 = vrot.slane %v200, 1
      %v202 = vadd.f32 %v200, %v201
      %s203 = vtos %v202
      %s204 = scalar_lea.smem [#allocation9], 0
      %205 = sst [smem:[%s204]] %s203
      %v206 = vld [vmem:[#allocation3] sm:$0x3]
      %v208 = vperm.slane %v206, 0
      %v209 = vperm.slane %v206, 1
      %v212 = vsel %vm154, %v208, 0.0
      %v213 = vsel %vm154, %v209, 0.0
      %v214 = vadd.f32 %v212, %v213
      %215 = vadd.xlane.f32.xlu0 %v214
      %v216 = vpop.xlane.xlu0 %215
      %v217 = vrot.slane %v216, 4
      %v218 = vadd.f32 %v216, %v217
      %v219 = vrot.slane %v218, 2
      %v220 = vadd.f32 %v218, %v219
      %v221 = vrot.slane %v220, 1
      %v222 = vadd.f32 %v220, %v221
      %s223 = vtos %v222
      %s224 = scalar_lea.smem [#allocation9], 1
      %225 = sst [smem:[%s224]] %s223
    $region25: #{tpu_custom_call.1} parent=1 // pred_fallthru
      _
    // Predicated region
    $region26: #{tpu_custom_call.1} parent=1 // pred_check
      _
    $region27: #{tpu_custom_call.1} parent=1 // pred_check_branch
      %227 = sbr.rel (0) target = $region29
    $region28: #{tpu_custom_call.1} parent=1 // pred_region
      %229 = vsyncadd [#allocation6], 0
      %s231 = sshll.u32 %s2, 4
      %s232 = int_to_ptr.hbm [resolvable:$true] %s231
      %234 = dma.smem_to_hbm [#allocation9], 16, %s232, [#allocation6]
    $region29: #{tpu_custom_call.1} parent=1 // pred_fallthru
      _
    // Predicated region
    $region30: #{tpu_custom_call.1} parent=1 // pred_check
      _
    $region31: #{tpu_custom_call.1} parent=1 // pred_check_branch
      %236 = sbr.rel (0) target = $region33
    $region32: #{tpu_custom_call.1} parent=1 // pred_region
      %238 = dma.done [#allocation6], 16
    $region33: #{tpu_custom_call.1} parent=1 // pred_fallthru
      _
    %239 = sfence
    %240 = vsyncpa [#allocation5], 1
    %241 = vsyncpa [#allocation8], 1
    %242 = vsyncpa [#allocation6], 1

</llo_original>
